<compile_context>
chip_gen: v5e
topology: v5e:2x2
jax: 0.10.0
libtpu: 0.0.40
codegen_flags: <defaults>
</compile_context>

<pallas_src>
import jax
import jax.numpy as jnp
from jax.experimental import pallas as pl
from jax.experimental.pallas import tpu as pltpu


def _pick_hw_tile(hw: int) -> int:
    """Lane tile: full extent when small, else a 128-multiple divisor (2k-8k lanes)."""
    if hw <= 4096:
        return hw
    for t in (8192, 4096, 2048, 1024, 512, 256, 128):
        if hw % t == 0:
            return t
    return hw


def cfg_denoise(x, sigma, uncond, cond, cond_scale, w1, w2):
    """x: [B,C,H,W] (NCHW), sigma: [B], uncond/cond: [B,T,D], Python-float cond_scale."""
    B, C, H, W = x.shape
    HW = H * W
    T, D = uncond.shape[1], uncond.shape[2]
    s = float(cond_scale)                      # fold at trace time (compile-time const)

    x_f = x.reshape(B * C, HW)                 # free contiguous flatten, fills 8 sublanes
    uc = jnp.stack([uncond, cond], axis=1).reshape(2 * B, T, D)  # one small operand

    hw_tile = _pick_hw_tile(HW)
    grid = (HW // hw_tile,)

    def kernel(sigma_ref, x_ref, uc_ref, w1_ref, w2_ref, out_ref):
        w1_t = w1_ref[...]                                          # [C, C]
        w2_t = w2_ref[...]                                          # [C, D]
        for b in range(B):                                          # B small & static -> unroll
            # --- conditioning path: CFG combine fused before the W2 contraction ---
            # u + s*(c - u) commutes with mean_t and (W2 @ .) because the inner
            # model is affine in cond.
            u = uc_ref[2 * b]                                       # [T, D]
            c = uc_ref[2 * b + 1]                                   # [T, D]
            comb = u + s * (c - u)                                  # [T, D]
            pooled = jnp.mean(comb, axis=0, keepdims=True)          # [1, D] sublane reduce
            bias = jnp.sum(w2_t * pooled, axis=1, keepdims=True)    # [C, 1] tiny matvec

            # --- x path (shared by both CFG branches) ---
            # Fold c_in = rsqrt(sigma^2 + 1) into the tiny [C,C] weight (EUP rsqrt
            # on a [1,1] tile) instead of scaling the [C,HW] activation.
            sig = sigma_ref[b]
            inv = jax.lax.rsqrt(sig * sig + jnp.ones((1, 1), jnp.float32))  # [1,1]
            w1s = w1_t * inv                                        # [C, C]

            xb = x_ref[b * C:(b + 1) * C, :]                        # [C, hw_tile]
            # K=C=4 channel mix as unrolled VPU broadcast-FMAs (MXU would be
            # <4% utilized at C=4; crossover to jnp.dot only at C ~ 128+).
            base = w1s[:, 0:1] * xb[0:1, :]
            for ch in range(1, C):
                base = base + w1s[:, ch:ch + 1] * xb[ch:ch + 1, :]  # [C, hw_tile]

            out_ref[b * C:(b + 1) * C, :] = base + bias

    itemsize = 4
    bytes_accessed = itemsize * (2 * B * C * HW + 2 * B * T * D + C * C + C * D + B)
    flops = B * (2 * C * C * HW + 4 * T * D + 2 * C * D + C * HW)
    cost = pl.CostEstimate(flops=flops, transcendentals=B, bytes_accessed=bytes_accessed)

    out = pl.pallas_call(
        kernel,
        out_shape=jax.ShapeDtypeStruct((B * C, HW), jnp.float32),
        grid_spec=pltpu.PrefetchScalarGridSpec(
            num_scalar_prefetch=0,
            grid=grid,
            in_specs=[
                pl.BlockSpec(memory_space=pltpu.MemorySpace.SMEM),         # sigma [B]
                pl.BlockSpec((B * C, hw_tile), lambda j: (0, j)),          # x   -> [B*C, tile]
                pl.BlockSpec((2 * B, T, D), lambda j: (0, 0, 0)),          # uncond|cond stacked
                pl.BlockSpec((C, C), lambda j: (0, 0)),                    # W1
                pl.BlockSpec((C, D), lambda j: (0, 0)),                    # W2
            ],
            out_specs=pl.BlockSpec((B * C, hw_tile), lambda j: (0, j)),
        ),
        compiler_params=pltpu.CompilerParams(
            dimension_semantics=("parallel",)),   # HW tiles split across v7x's 2 TCs
        cost_estimate=cost,
    )(sigma, x_f, uc, w1, w2)

    return out.reshape(B, C, H, W)


# ---------------- pure-JAX reference (literal cat / chunk semantics) --------
def _inner_model_ref(x_in, sigma_in, cond_in, w1, w2):
    c_in = 1.0 / jnp.sqrt(sigma_in ** 2 + 1.0)
    h = x_in * c_in[:, None, None, None]
    base = jnp.einsum('oc,bchw->bohw', w1, h)
    p = jnp.mean(jnp.einsum('od,btd->bot', w2, cond_in), axis=-1)   # [2B, C]
    return base + p[:, :, None, None]


def cfg_reference(x, sigma, uncond, cond, cond_scale, w1, w2):
    x_in = jnp.concatenate([x] * 2)
    sigma_in = jnp.concatenate([sigma] * 2)
    cond_in = jnp.concatenate([uncond, cond])
    out = _inner_model_ref(x_in, sigma_in, cond_in, w1, w2)
    u, c = jnp.split(out, 2)
    return u + (c - u) * cond_scale


if __name__ == "__main__":
    key = jax.random.PRNGKey(0)
    B, C, H, W, T, D = 2, 4, 16, 16, 8, 32
    k1, k2, k3, k4, k5, k6 = jax.random.split(key, 6)

    x = jax.random.normal(k1, (B, C, H, W), jnp.float32)
    sigma = jax.random.uniform(k2, (B,), jnp.float32, 0.5, 2.0)
    uncond = jax.random.normal(k3, (B, T, D), jnp.float32)
    cond = jax.random.normal(k4, (B, T, D), jnp.float32)
    w1 = jax.random.normal(k5, (C, C), jnp.float32) / jnp.sqrt(C)
    w2 = jax.random.normal(k6, (C, D), jnp.float32) / jnp.sqrt(D)
    cond_scale = 7.5

    out = cfg_denoise(x, sigma, uncond, cond, cond_scale, w1, w2)
    jax.block_until_ready(out)

    ref = cfg_reference(x, sigma, uncond, cond, cond_scale, w1, w2)
    assert out.shape == (B, C, H, W)
    assert jnp.allclose(out, ref, atol=1e-4, rtol=1e-4), "mismatch vs reference"

    print("KERNEL_OK")
</pallas_src>

<mosaic_0001>
module attributes {stable_mosaic.version = 11 : i64} {
  func.func @kernel(%arg0: i32, %arg1: memref<2xf32, #tpu.memory_space<smem>>, %arg2: memref<8x256xf32, #tpu.memory_space<vmem>>, %arg3: memref<4x8x32xf32, #tpu.memory_space<vmem>>, %arg4: memref<4x4xf32, #tpu.memory_space<vmem>>, %arg5: memref<4x32xf32, #tpu.memory_space<vmem>>, %arg6: memref<8x256xf32, #tpu.memory_space<vmem>>) attributes {dimension_semantics = [#tpu.dimension_semantics<parallel>], iteration_bounds = array<i64: 1>, scalar_prefetch = 0 : i64, scratch_operands = 0 : i64, tpu.core_type = #tpu.core_type<tc>, window_params = [{transform_indices = @transform_0, window_bounds = array<i64: 2>}, {transform_indices = @transform_1, window_bounds = array<i64: 8, 256>}, {pipeline_mode = #tpu.pipeline_mode<synchronous>, transform_indices = @transform_2, window_bounds = array<i64: 4, 8, 32>}, {pipeline_mode = #tpu.pipeline_mode<synchronous>, transform_indices = @transform_3, window_bounds = array<i64: 4, 4>}, {pipeline_mode = #tpu.pipeline_mode<synchronous>, transform_indices = @transform_4, window_bounds = array<i64: 4, 32>}, {transform_indices = @transform_5, window_bounds = array<i64: 8, 256>}]} {
    %c0 = arith.constant 0 : index
    %c0_0 = arith.constant 0 : index
    %0 = vector.load %arg4[%c0, %c0_0] : memref<4x4xf32, #tpu.memory_space<vmem>>, vector<4x4xf32>
    %c0_1 = arith.constant 0 : index
    %c0_2 = arith.constant 0 : index
    %1 = vector.load %arg5[%c0_1, %c0_2] : memref<4x32xf32, #tpu.memory_space<vmem>>, vector<4x32xf32>
    %c0_3 = arith.constant 0 : index
    %c0_4 = arith.constant 0 : index
    %c0_5 = arith.constant 0 : index
    %2 = vector.load %arg3[%c0_3, %c0_4, %c0_5] : memref<4x8x32xf32, #tpu.memory_space<vmem>>, vector<1x8x32xf32>
    %3 = vector.shape_cast %2 : vector<1x8x32xf32> to vector<8x32xf32>
    %c1 = arith.constant 1 : index
    %c0_6 = arith.constant 0 : index
    %c0_7 = arith.constant 0 : index
    %4 = vector.load %arg3[%c1, %c0_6, %c0_7] : memref<4x8x32xf32, #tpu.memory_space<vmem>>, vector<1x8x32xf32>
    %5 = vector.shape_cast %4 : vector<1x8x32xf32> to vector<8x32xf32>
    %6 = arith.subf %5, %3 : vector<8x32xf32>
    %cst = arith.constant 7.500000e+00 : f32
    %7 = vector.broadcast %cst : f32 to vector<8x32xf32>
    %8 = arith.mulf %7, %6 : vector<8x32xf32>
    %9 = arith.addf %3, %8 : vector<8x32xf32>
    %cst_8 = arith.constant dense<0.000000e+00> : vector<32xf32>
    %10 = vector.multi_reduction <add>, %9, %cst_8 [0] : vector<8x32xf32> to vector<32xf32>
    %11 = vector.shape_cast %10 : vector<32xf32> to vector<1x32xf32>
    %cst_9 = arith.constant 8.000000e+00 : f32
    %12 = vector.broadcast %cst_9 : f32 to vector<1x32xf32>
    %13 = arith.divf %11, %12 : vector<1x32xf32>
    %14 = vector.broadcast %13 : vector<1x32xf32> to vector<4x32xf32>
    %15 = arith.mulf %1, %14 : vector<4x32xf32>
    %cst_10 = arith.constant dense<0.000000e+00> : vector<4xf32>
    %16 = vector.multi_reduction <add>, %15, %cst_10 [1] : vector<4x32xf32> to vector<4xf32>
    %17 = vector.shape_cast %16 : vector<4xf32> to vector<4x1xf32>
    %c0_11 = arith.constant 0 : index
    %18 = memref.load %arg1[%c0_11] : memref<2xf32, #tpu.memory_space<smem>>
    %19 = arith.mulf %18, %18 : f32
    %cst_12 = arith.constant 1.000000e+00 : f32
    %20 = vector.broadcast %cst_12 : f32 to vector<1x1xf32>
    %21 = vector.broadcast %19 : f32 to vector<1x1xf32>
    %22 = arith.addf %21, %20 : vector<1x1xf32>
    %23 = math.rsqrt %22 : vector<1x1xf32>
    %24 = vector.broadcast %23 : vector<1x1xf32> to vector<4x4xf32>
    %25 = arith.mulf %0, %24 : vector<4x4xf32>
    %c0_13 = arith.constant 0 : index
    %c0_14 = arith.constant 0 : index
    %26 = vector.load %arg2[%c0_13, %c0_14] : memref<8x256xf32, #tpu.memory_space<vmem>>, vector<4x256xf32>
    %27 = vector.extract_strided_slice %25 {offsets = [0, 0], sizes = [4, 1], strides = [1, 1]} : vector<4x4xf32> to vector<4x1xf32>
    %28 = vector.extract_strided_slice %26 {offsets = [0, 0], sizes = [1, 256], strides = [1, 1]} : vector<4x256xf32> to vector<1x256xf32>
    %29 = vector.broadcast %27 : vector<4x1xf32> to vector<4x256xf32>
    %30 = vector.broadcast %28 : vector<1x256xf32> to vector<4x256xf32>
    %31 = arith.mulf %29, %30 : vector<4x256xf32>
    %32 = vector.extract_strided_slice %25 {offsets = [0, 1], sizes = [4, 1], strides = [1, 1]} : vector<4x4xf32> to vector<4x1xf32>
    %33 = vector.extract_strided_slice %26 {offsets = [1, 0], sizes = [1, 256], strides = [1, 1]} : vector<4x256xf32> to vector<1x256xf32>
    %34 = vector.broadcast %32 : vector<4x1xf32> to vector<4x256xf32>
    %35 = vector.broadcast %33 : vector<1x256xf32> to vector<4x256xf32>
    %36 = arith.mulf %34, %35 : vector<4x256xf32>
    %37 = arith.addf %31, %36 : vector<4x256xf32>
    %38 = vector.extract_strided_slice %25 {offsets = [0, 2], sizes = [4, 1], strides = [1, 1]} : vector<4x4xf32> to vector<4x1xf32>
    %39 = vector.extract_strided_slice %26 {offsets = [2, 0], sizes = [1, 256], strides = [1, 1]} : vector<4x256xf32> to vector<1x256xf32>
    %40 = vector.broadcast %38 : vector<4x1xf32> to vector<4x256xf32>
    %41 = vector.broadcast %39 : vector<1x256xf32> to vector<4x256xf32>
    %42 = arith.mulf %40, %41 : vector<4x256xf32>
    %43 = arith.addf %37, %42 : vector<4x256xf32>
    %44 = vector.extract_strided_slice %25 {offsets = [0, 3], sizes = [4, 1], strides = [1, 1]} : vector<4x4xf32> to vector<4x1xf32>
    %45 = vector.extract_strided_slice %26 {offsets = [3, 0], sizes = [1, 256], strides = [1, 1]} : vector<4x256xf32> to vector<1x256xf32>
    %46 = vector.broadcast %44 : vector<4x1xf32> to vector<4x256xf32>
    %47 = vector.broadcast %45 : vector<1x256xf32> to vector<4x256xf32>
    %48 = arith.mulf %46, %47 : vector<4x256xf32>
    %49 = arith.addf %43, %48 : vector<4x256xf32>
    %50 = vector.broadcast %17 : vector<4x1xf32> to vector<4x256xf32>
    %51 = arith.addf %49, %50 : vector<4x256xf32>
    %c0_15 = arith.constant 0 : index
    %c0_16 = arith.constant 0 : index
    %52 = vector.load %arg6[%c0_15, %c0_16] : memref<8x256xf32, #tpu.memory_space<vmem>>, vector<4x256xf32>
    tpu.vector_store %arg6[%c0_15, %c0_16], %51 {strides = array<i32>} : memref<8x256xf32, #tpu.memory_space<vmem>>, vector<4x256xf32>,
    %c2 = arith.constant 2 : index
    %c0_17 = arith.constant 0 : index
    %c0_18 = arith.constant 0 : index
    %53 = vector.load %arg3[%c2, %c0_17, %c0_18] : memref<4x8x32xf32, #tpu.memory_space<vmem>>, vector<1x8x32xf32>
    %54 = vector.shape_cast %53 : vector<1x8x32xf32> to vector<8x32xf32>
    %c3 = arith.constant 3 : index
    %c0_19 = arith.constant 0 : index
    %c0_20 = arith.constant 0 : index
    %55 = vector.load %arg3[%c3, %c0_19, %c0_20] : memref<4x8x32xf32, #tpu.memory_space<vmem>>, vector<1x8x32xf32>
    %56 = vector.shape_cast %55 : vector<1x8x32xf32> to vector<8x32xf32>
    %57 = arith.subf %56, %54 : vector<8x32xf32>
    %cst_21 = arith.constant 7.500000e+00 : f32
    %58 = vector.broadcast %cst_21 : f32 to vector<8x32xf32>
    %59 = arith.mulf %58, %57 : vector<8x32xf32>
    %60 = arith.addf %54, %59 : vector<8x32xf32>
    %cst_22 = arith.constant dense<0.000000e+00> : vector<32xf32>
    %61 = vector.multi_reduction <add>, %60, %cst_22 [0] : vector<8x32xf32> to vector<32xf32>
    %62 = vector.shape_cast %61 : vector<32xf32> to vector<1x32xf32>
    %cst_23 = arith.constant 8.000000e+00 : f32
    %63 = vector.broadcast %cst_23 : f32 to vector<1x32xf32>
    %64 = arith.divf %62, %63 : vector<1x32xf32>
    %65 = vector.broadcast %64 : vector<1x32xf32> to vector<4x32xf32>
    %66 = arith.mulf %1, %65 : vector<4x32xf32>
    %cst_24 = arith.constant dense<0.000000e+00> : vector<4xf32>
    %67 = vector.multi_reduction <add>, %66, %cst_24 [1] : vector<4x32xf32> to vector<4xf32>
    %68 = vector.shape_cast %67 : vector<4xf32> to vector<4x1xf32>
    %c1_25 = arith.constant 1 : index
    %69 = memref.load %arg1[%c1_25] : memref<2xf32, #tpu.memory_space<smem>>
    %70 = arith.mulf %69, %69 : f32
    %cst_26 = arith.constant 1.000000e+00 : f32
    %71 = vector.broadcast %cst_26 : f32 to vector<1x1xf32>
    %72 = vector.broadcast %70 : f32 to vector<1x1xf32>
    %73 = arith.addf %72, %71 : vector<1x1xf32>
    %74 = math.rsqrt %73 : vector<1x1xf32>
    %75 = vector.broadcast %74 : vector<1x1xf32> to vector<4x4xf32>
    %76 = arith.mulf %0, %75 : vector<4x4xf32>
    %c4 = arith.constant 4 : index
    %c0_27 = arith.constant 0 : index
    %77 = vector.load %arg2[%c4, %c0_27] : memref<8x256xf32, #tpu.memory_space<vmem>>, vector<4x256xf32>
    %78 = vector.extract_strided_slice %76 {offsets = [0, 0], sizes = [4, 1], strides = [1, 1]} : vector<4x4xf32> to vector<4x1xf32>
    %79 = vector.extract_strided_slice %77 {offsets = [0, 0], sizes = [1, 256], strides = [1, 1]} : vector<4x256xf32> to vector<1x256xf32>
    %80 = vector.broadcast %78 : vector<4x1xf32> to vector<4x256xf32>
    %81 = vector.broadcast %79 : vector<1x256xf32> to vector<4x256xf32>
    %82 = arith.mulf %80, %81 : vector<4x256xf32>
    %83 = vector.extract_strided_slice %76 {offsets = [0, 1], sizes = [4, 1], strides = [1, 1]} : vector<4x4xf32> to vector<4x1xf32>
    %84 = vector.extract_strided_slice %77 {offsets = [1, 0], sizes = [1, 256], strides = [1, 1]} : vector<4x256xf32> to vector<1x256xf32>
    %85 = vector.broadcast %83 : vector<4x1xf32> to vector<4x256xf32>
    %86 = vector.broadcast %84 : vector<1x256xf32> to vector<4x256xf32>
    %87 = arith.mulf %85, %86 : vector<4x256xf32>
    %88 = arith.addf %82, %87 : vector<4x256xf32>
    %89 = vector.extract_strided_slice %76 {offsets = [0, 2], sizes = [4, 1], strides = [1, 1]} : vector<4x4xf32> to vector<4x1xf32>
    %90 = vector.extract_strided_slice %77 {offsets = [2, 0], sizes = [1, 256], strides = [1, 1]} : vector<4x256xf32> to vector<1x256xf32>
    %91 = vector.broadcast %89 : vector<4x1xf32> to vector<4x256xf32>
    %92 = vector.broadcast %90 : vector<1x256xf32> to vector<4x256xf32>
    %93 = arith.mulf %91, %92 : vector<4x256xf32>
    %94 = arith.addf %88, %93 : vector<4x256xf32>
    %95 = vector.extract_strided_slice %76 {offsets = [0, 3], sizes = [4, 1], strides = [1, 1]} : vector<4x4xf32> to vector<4x1xf32>
    %96 = vector.extract_strided_slice %77 {offsets = [3, 0], sizes = [1, 256], strides = [1, 1]} : vector<4x256xf32> to vector<1x256xf32>
    %97 = vector.broadcast %95 : vector<4x1xf32> to vector<4x256xf32>
    %98 = vector.broadcast %96 : vector<1x256xf32> to vector<4x256xf32>
    %99 = arith.mulf %97, %98 : vector<4x256xf32>
    %100 = arith.addf %94, %99 : vector<4x256xf32>
    %101 = vector.broadcast %68 : vector<4x1xf32> to vector<4x256xf32>
    %102 = arith.addf %100, %101 : vector<4x256xf32>
    %c4_28 = arith.constant 4 : index
    %c0_29 = arith.constant 0 : index
    %103 = vector.load %arg6[%c4_28, %c0_29] : memref<8x256xf32, #tpu.memory_space<vmem>>, vector<4x256xf32>
    tpu.vector_store %arg6[%c4_28, %c0_29], %102 {strides = array<i32>} : memref<8x256xf32, #tpu.memory_space<vmem>>, vector<4x256xf32>,
    return
  }
  func.func @transform_0(%arg0: i32) -> i32 {
    %c0_i32 = arith.constant 0 : i32
    %c0_i32_0 = arith.constant 0 : i32
    return %c0_i32 : i32
  }
  func.func @transform_1(%arg0: i32) -> (i32, i32) {
    %c0_i32 = arith.constant 0 : i32
    %c0_i32_0 = arith.constant 0 : i32
    return %c0_i32, %arg0 : i32, i32
  }
  func.func @transform_2(%arg0: i32) -> (i32, i32, i32) {
    %c0_i32 = arith.constant 0 : i32
    %c0_i32_0 = arith.constant 0 : i32
    %c0_i32_1 = arith.constant 0 : i32
    %c0_i32_2 = arith.constant 0 : i32
    return %c0_i32, %c0_i32_0, %c0_i32_1 : i32, i32, i32
  }
  func.func @transform_3(%arg0: i32) -> (i32, i32) {
    %c0_i32 = arith.constant 0 : i32
    %c0_i32_0 = arith.constant 0 : i32
    %c0_i32_1 = arith.constant 0 : i32
    return %c0_i32, %c0_i32_0 : i32, i32
  }
  func.func @transform_4(%arg0: i32) -> (i32, i32) {
    %c0_i32 = arith.constant 0 : i32
    %c0_i32_0 = arith.constant 0 : i32
    %c0_i32_1 = arith.constant 0 : i32
    return %c0_i32, %c0_i32_0 : i32, i32
  }
  func.func @transform_5(%arg0: i32) -> (i32, i32) {
    %c0_i32 = arith.constant 0 : i32
    %c0_i32_0 = arith.constant 0 : i32
    return %c0_i32, %arg0 : i32, i32
  }
}

</mosaic_0001>

<llo_original>
// kernel: tpu_custom_call.1
$region0: #{tpu_custom_call.1}
  #allocation0 [shape = 'u32[]', space=smem, size = 0x4, offset = 0x4, fixed_abs, tag = 'smem constant byte address 0x4 - core index']
  #allocation1 [shape = 'u32[72,128]{1,0:T(1,128)}', space=vmem, size = 0x9000, scoped, tag = 'internal scratch']
  %s0 = inlined_call_operand.hbm [shape: f32[2], index: 0, kind: input, shape index: {}]
  %s1 = inlined_call_operand.hbm [shape: f32[8,256], index: 1, kind: input, shape index: {}]
  %s2 = inlined_call_operand.hbm [shape: f32[4,8,32], index: 2, kind: input, shape index: {}]
  %s3 = inlined_call_operand.hbm [shape: f32[4,4], index: 3, kind: input, shape index: {}]
  %s4 = inlined_call_operand.hbm [shape: f32[4,32], index: 4, kind: input, shape index: {}]
  %s5 = inlined_call_operand.hbm [shape: f32[8,256], index: 5, kind: output, shape index: {}]
  %s6 = sld [smem:[#allocation0]]
  $region50: #{tpu_custom_call.1} parent=0
    _
  %s8 = ssub.s32 1, %s6
  %s9 = scalar_select 0, %s8, %s6
  $region1: #{tpu_custom_call.1} parent=0
    #allocation2 [shape = 'u8[512]{0}', space=smem, size = 0x200, scoped, tag = 'input window, operand 0, single buffered']
    #allocation3 [shape = 's32[1]{0}', space=sflag, size = 0x4, scoped, tag = 'scoped memory for tpu_custom_call.1']
    #allocation4 [shape = 's32[1]{0}', space=sflag, size = 0x4, scoped, tag = 'scoped memory for tpu_custom_call.1']
    #allocation5 [shape = 's32[1]{0}', space=sflag, size = 0x4, scoped, tag = 'scoped memory for tpu_custom_call.1']
    #allocation6 [shape = 'u8[8192]{0}', space=vmem, size = 0x2000, scoped, tag = 'input window, operand 1, single buffered']
    #allocation7 [shape = 'u8[16384]{0}', space=vmem, size = 0x4000, scoped, tag = 'input window, operand 2, single buffered']
    #allocation8 [shape = 's32[1]{0}', space=sflag, size = 0x4, scoped, tag = 'scoped memory for tpu_custom_call.1']
    #allocation9 [shape = 'u8[2048]{0}', space=vmem, size = 0x800, scoped, tag = 'input window, operand 3, single buffered']
    #allocation10 [shape = 'u8[2048]{0}', space=vmem, size = 0x800, scoped, tag = 'input window, operand 4, single buffered']
    #allocation11 [shape = 's32[1]{0}', space=sflag, size = 0x4, scoped, tag = 'scoped memory for tpu_custom_call.1']
    #allocation12 [shape = 'u8[8192]{0}', space=vmem, size = 0x2000, scoped, tag = 'output window, operand 0, single buffered']
    %10 = vsyncpa [#allocation5], 0
    %11 = vsyncpa [#allocation3], 0
    %12 = vsyncpa [#allocation8], 0
    %13 = vsyncpa [#allocation11], 0
    %14 = vsyncpa [#allocation4], 0
    // Predicated region
    $region2: #{tpu_custom_call.1} parent=1 // pred_check
      _
    $region3: #{tpu_custom_call.1} parent=1 // pred_check_branch
      %16 = sbr.rel (0) target = $region5
    $region4: #{tpu_custom_call.1} parent=1 // pred_region
      %18 = vsyncadd [#allocation5], 0
      %s20 = sshll.u32 %s0, 4
      %s21 = int_to_ptr.hbm [resolvable:$true] %s20
      %23 = dma.hbm_to_smem %s21, 16, [#allocation2], [#allocation5]
    $region5: #{tpu_custom_call.1} parent=1 // pred_fallthru
      _
    // Predicated region
    $region6: #{tpu_custom_call.1} parent=1 // pred_check
      _
    $region7: #{tpu_custom_call.1} parent=1 // pred_check_branch
      %25 = sbr.rel (0) target = $region9
    $region8: #{tpu_custom_call.1} parent=1 // pred_region
      %27 = vsyncadd [#allocation3], 0
      %s29 = sshll.u32 %s1, 4
      %s30 = int_to_ptr.hbm [resolvable:$true] %s29
      %s31 = sshll.u32 [#allocation6], 4
      %s32 = int_to_ptr.vmem [resolvable:$true] %s31
      %34 = dma.hbm_to_vmem [thread:$0]  %s30, 256, %s32, [#allocation3]
    $region9: #{tpu_custom_call.1} parent=1 // pred_fallthru
      _
    // Predicated region
    $region10: #{tpu_custom_call.1} parent=1 // pred_check
      _
    $region11: #{tpu_custom_call.1} parent=1 // pred_check_branch
      %36 = sbr.rel (0) target = $region13
    $region12: #{tpu_custom_call.1} parent=1 // pred_region
      %38 = vsyncadd [#allocation8], 0
      %s39 = sshll.u32 %s2, 4
      %s40 = int_to_ptr.hbm [resolvable:$true] %s39
      %s41 = sshll.u32 [#allocation7], 4
      %s42 = int_to_ptr.vmem [resolvable:$true] %s41
      %47 = dma.hbm_to_vmem [thread:$0]  %s40, 512, %s42, [#allocation8], 128, 128, 8
    $region13: #{tpu_custom_call.1} parent=1 // pred_fallthru
      _
    // Predicated region
    $region14: #{tpu_custom_call.1} parent=1 // pred_check
      _
    $region15: #{tpu_custom_call.1} parent=1 // pred_check_branch
      %49 = sbr.rel (0) target = $region17
    $region16: #{tpu_custom_call.1} parent=1 // pred_region
      %51 = vsyncadd [#allocation8], 0
      %s53 = sshll.u32 %s3, 4
      %s54 = int_to_ptr.hbm [resolvable:$true] %s53
      %s55 = sshll.u32 [#allocation9], 4
      %s56 = int_to_ptr.vmem [resolvable:$true] %s55
      %58 = dma.hbm_to_vmem [thread:$0]  %s54, 64, %s56, [#allocation8]
    $region17: #{tpu_custom_call.1} parent=1 // pred_fallthru
      _
    // Predicated region
    $region18: #{tpu_custom_call.1} parent=1 // pred_check
      _
    $region19: #{tpu_custom_call.1} parent=1 // pred_check_branch
      %60 = sbr.rel (0) target = $region21
    $region20: #{tpu_custom_call.1} parent=1 // pred_region
      %62 = vsyncadd [#allocation11], 0
      %s64 = sshll.u32 %s4, 4
      %s65 = int_to_ptr.hbm [resolvable:$true] %s64
      %s66 = sshll.u32 [#allocation10], 4
      %s67 = int_to_ptr.vmem [resolvable:$true] %s66
      %69 = dma.hbm_to_vmem [thread:$0]  %s65, 64, %s67, [#allocation11]
    $region21: #{tpu_custom_call.1} parent=1 // pred_fallthru
      _
    // Predicated region
    $region22: #{tpu_custom_call.1} parent=1 // pred_check
      _
    $region23: #{tpu_custom_call.1} parent=1 // pred_check_branch
      %71 = sbr.rel (0) target = $region25
    $region24: #{tpu_custom_call.1} parent=1 // pred_region
      %73 = dma.done [#allocation5], 16
    $region25: #{tpu_custom_call.1} parent=1 // pred_fallthru
      _
    // Predicated region
    $region26: #{tpu_custom_call.1} parent=1 // pred_check
      _
    $region27: #{tpu_custom_call.1} parent=1 // pred_check_branch
      %75 = sbr.rel (0) target = $region29
    $region28: #{tpu_custom_call.1} parent=1 // pred_region
      %77 = dma.done [#allocation3], 256
    $region29: #{tpu_custom_call.1} parent=1 // pred_fallthru
      _
    // Predicated region
    $region30: #{tpu_custom_call.1} parent=1 // pred_check
      _
    $region31: #{tpu_custom_call.1} parent=1 // pred_check_branch
      %79 = sbr.rel (0) target = $region33
    $region32: #{tpu_custom_call.1} parent=1 // pred_region
      %81 = dma.done [#allocation8], 512
    $region33: #{tpu_custom_call.1} parent=1 // pred_fallthru
      _
    // Predicated region
    $region34: #{tpu_custom_call.1} parent=1 // pred_check
      _
    $region35: #{tpu_custom_call.1} parent=1 // pred_check_branch
      %83 = sbr.rel (0) target = $region37
    $region36: #{tpu_custom_call.1} parent=1 // pred_region
      %85 = dma.done [#allocation8], 64
    $region37: #{tpu_custom_call.1} parent=1 // pred_fallthru
      _
    // Predicated region
    $region38: #{tpu_custom_call.1} parent=1 // pred_check
      _
    $region39: #{tpu_custom_call.1} parent=1 // pred_check_branch
      %87 = sbr.rel (0) target = $region41
    $region40: #{tpu_custom_call.1} parent=1 // pred_region
      %89 = dma.done [#allocation11], 64
    $region41: #{tpu_custom_call.1} parent=1 // pred_fallthru
      _
    %90 = sfence
    %v91 = vld [vmem:[#allocation9] sm:$0xf]
    %v92 = vld [vmem:[#allocation10] sm:$0xf]
    %v93 = vld [vmem:[#allocation7] sm:$0xff]
    %s94 = scalar_lea.vmem [#allocation7], 8
    %v95 = vld [vmem:[%s94] sm:$0xff]
    %v96 = vsub.f32 %v95, %v93
    %v97 = vmul.f32 %v96, 7.5
    %v98 = vadd.f32 %v93, %v97
    %vm99 = vcmask 261120
    %v100 = vsel %vm99, %v98, 0.0
    %v101 = vrot.slane %v100, 4
    %v102 = vadd.f32 %v100, %v101
    %v103 = vrot.slane %v102, 2
    %v104 = vadd.f32 %v102, %v103
    %v105 = vrot.slane %v104, 1
    %v106 = vadd.f32 %v104, %v105
    %v107 = vrcp.pop 8.0
    %v108 = vmul.f32 8.0, %v107
    %v109 = vsub.f32 1.0, %v108
    %v110 = vmul.f32 %v107, %v109
    %v111 = vadd.f32 %v107, %v110
    %vm112 = vweird.f32 %v107
    %v113 = vsel %vm112, %v107, %v111
    %v114 = vmul.f32 %v106, %v113
    %v115 = vmul.f32 %v92, %v114
    %vm116 = vcmask 257024
    %v117 = vsel %vm116, %v115, 0.0
    %118 = vadd.xlane.f32.xlu0 %v117
    %v119 = vpop.xlane.xlu0 %118
    %s120 = sld [smem:[#allocation2]]
    %s121 = smul.f32 %s120, %s120
    %v122 = vstv %s121
    %v123 = vadd.f32 %v122, 1.0
    %v124 = vrsqrt.pop %v123
    %v125 = vmul.f32 %v124, %v123
    %v126 = vmul.f32 %v125, %v124
    %v127 = vmul.f32 0.5, %v126
    %v128 = vsub.f32 1.5, %v127
    %v129 = vmul.f32 %v124, %v128
    %vm130 = vweird.f32 %v123
    %vm131 = vweird.f32 %v124
    %vm132 = vmor %vm130, %vm131
    %v133 = vsel %vm132, %v124, %v129
    %v134 = vmul.f32 %v91, %v133
    %v135 = vld [vmem:[#allocation6] sm:$0xf]
    %v136 = vld [vmem:[#allocation6 + $0x8] sm:$0xf]
    %138 = vset.pattern.permute.xlu0 0
    %139 = vperm.xlu0 %138, %v134
    %v140 = vpop.permute.xlu0 %139
    %v142 = vperm.slane %v135, 0
    %v143 = vperm.slane %v136, 0
    %v144 = vmul.f32 %v140, %v142
    %v145 = vmul.f32 %v140, %v143
    %146 = vset.pattern.permute.xlu0 1
    %147 = vperm.xlu0 %146, %v134
    %v148 = vpop.permute.xlu0 %147
    %v150 = vperm.slane %v135, 1
    %v151 = vperm.slane %v136, 1
    %v152 = vmul.f32 %v148, %v150
    %v153 = vmul.f32 %v148, %v151
    %v154 = vadd.f32 %v144, %v152
    %v155 = vadd.f32 %v145, %v153
    %156 = vset.pattern.permute.xlu0 2
    %157 = vperm.xlu0 %156, %v134
    %v158 = vpop.permute.xlu0 %157
    %v160 = vperm.slane %v135, 2
    %v161 = vperm.slane %v136, 2
    %v162 = vmul.f32 %v158, %v160
    %v163 = vmul.f32 %v158, %v161
    %v164 = vadd.f32 %v154, %v162
    %v165 = vadd.f32 %v155, %v163
    %166 = vset.pattern.permute.xlu0 3
    %167 = vperm.xlu0 %166, %v134
    %v168 = vpop.permute.xlu0 %167
    %v170 = vperm.slane %v135, 3
    %v171 = vperm.slane %v136, 3
    %v172 = vmul.f32 %v168, %v170
    %v173 = vmul.f32 %v168, %v171
    %v174 = vadd.f32 %v164, %v172
    %v175 = vadd.f32 %v165, %v173
    %v176 = vadd.f32 %v174, %v119
    %v177 = vadd.f32 %v175, %v119
    %178 = vst [vmem:[#allocation12] sm:$0xf] %v176
    %179 = vst [vmem:[#allocation12 + $0x8] sm:$0xf] %v177
    %s180 = scalar_lea.vmem [#allocation7], 16
    %v181 = vld [vmem:[%s180] sm:$0xff]
    %s182 = scalar_lea.vmem [#allocation7], 24
    %v183 = vld [vmem:[%s182] sm:$0xff]
    %v184 = vsub.f32 %v183, %v181
    %v185 = vmul.f32 %v184, 7.5
    %v186 = vadd.f32 %v181, %v185
    %v187 = vsel %vm99, %v186, 0.0
    %v188 = vrot.slane %v187, 4
    %v189 = vadd.f32 %v187, %v188
    %v190 = vrot.slane %v189, 2
    %v191 = vadd.f32 %v189, %v190
    %v192 = vrot.slane %v191, 1
    %v193 = vadd.f32 %v191, %v192
    %v194 = vmul.f32 %v193, %v113
    %v195 = vmul.f32 %v92, %v194
    %v196 = vsel %vm116, %v195, 0.0
    %197 = vadd.xlane.f32.xlu0 %v196
    %v198 = vpop.xlane.xlu0 %197
    %s199 = sld [smem:[#allocation2 + $0x1]]
    %s200 = smul.f32 %s199, %s199
    %v201 = vstv %s200
    %v202 = vadd.f32 %v201, 1.0
    %v203 = vrsqrt.pop %v202
    %v204 = vmul.f32 %v203, %v202
    %v205 = vmul.f32 %v204, %v203
    %v206 = vmul.f32 0.5, %v205
    %v207 = vsub.f32 1.5, %v206
    %v208 = vmul.f32 %v203, %v207
    %vm209 = vweird.f32 %v202
    %vm210 = vweird.f32 %v203
    %vm211 = vmor %vm209, %vm210
    %v212 = vsel %vm211, %v203, %v208
    %v213 = vmul.f32 %v91, %v212
    %v214 = vld [vmem:[#allocation6] sm:$0xf0]
    %v215 = vld [vmem:[#allocation6 + $0x8] sm:$0xf0]
    %217 = vset.pattern.permute.xlu0 0
    %218 = vperm.xlu0 %217, %v213
    %v219 = vpop.permute.xlu0 %218
    %v221 = vperm.slane %v214, 4
    %v222 = vperm.slane %v215, 4
    %v223 = vmul.f32 %v219, %v221
    %v224 = vmul.f32 %v219, %v222
    %225 = vset.pattern.permute.xlu0 1
    %226 = vperm.xlu0 %225, %v213
    %v227 = vpop.permute.xlu0 %226
    %v229 = vperm.slane %v214, 5
    %v230 = vperm.slane %v215, 5
    %v231 = vmul.f32 %v227, %v229
    %v232 = vmul.f32 %v227, %v230
    %v233 = vadd.f32 %v223, %v231
    %v234 = vadd.f32 %v224, %v232
    %235 = vset.pattern.permute.xlu0 2
    %236 = vperm.xlu0 %235, %v213
    %v237 = vpop.permute.xlu0 %236
    %v239 = vperm.slane %v214, 6
    %v240 = vperm.slane %v215, 6
    %v241 = vmul.f32 %v237, %v239
    %v242 = vmul.f32 %v237, %v240
    %v243 = vadd.f32 %v233, %v241
    %v244 = vadd.f32 %v234, %v242
    %245 = vset.pattern.permute.xlu0 3
    %246 = vperm.xlu0 %245, %v213
    %v247 = vpop.permute.xlu0 %246
    %v249 = vperm.slane %v214, 7
    %v250 = vperm.slane %v215, 7
    %v251 = vmul.f32 %v247, %v249
    %v252 = vmul.f32 %v247, %v250
    %v253 = vadd.f32 %v243, %v251
    %v254 = vadd.f32 %v244, %v252
    %v255 = vadd.f32 %v253, %v198
    %v256 = vadd.f32 %v254, %v198
    %v259 = vrot.slane %v255, 4
    %v260 = vrot.slane %v256, 4
    %263 = vst [vmem:[#allocation12] sm:$0xf0] %v259
    %264 = vst [vmem:[#allocation12 + $0x8] sm:$0xf0] %v260
    // Predicated region
    $region42: #{tpu_custom_call.1} parent=1 // pred_check
      _
    $region43: #{tpu_custom_call.1} parent=1 // pred_check_branch
      %266 = sbr.rel (0) target = $region45
    $region44: #{tpu_custom_call.1} parent=1 // pred_region
      %268 = vsyncadd [#allocation4], 0
      %s270 = sshll.u32 [#allocation12], 4
      %s271 = int_to_ptr.vmem [resolvable:$true] %s270
      %s272 = sshll.u32 %s5, 4
      %s273 = int_to_ptr.hbm [resolvable:$true] %s272
      %275 = dma.vmem_to_hbm [thread:$0]  %s271, 256, %s273, [#allocation4]
    $region45: #{tpu_custom_call.1} parent=1 // pred_fallthru
      _
    // Predicated region
    $region46: #{tpu_custom_call.1} parent=1 // pred_check
      _
    $region47: #{tpu_custom_call.1} parent=1 // pred_check_branch
      %277 = sbr.rel (0) target = $region49
    $region48: #{tpu_custom_call.1} parent=1 // pred_region
      %279 = dma.done [#allocation4], 256
    $region49: #{tpu_custom_call.1} parent=1 // pred_fallthru
      _
    %280 = vsyncpa [#allocation3], 1
    %281 = vsyncpa [#allocation8], 1
    %282 = vsyncpa [#allocation11], 1
    %283 = vsyncpa [#allocation4], 1
    %284 = vsyncpa [#allocation5], 1

</llo_original>
